<compile_context>
chip_gen: v7x
topology: tpu7x:2x2x1
jax: 0.10.0
libtpu: 0.0.40
codegen_flags: <defaults>
</compile_context>

<pallas_src>
import jax
import jax.numpy as jnp
from jax import lax
from jax.experimental import pallas as pl
from jax.experimental.pallas import tpu as pltpu

N_DICT = 127            # vocab = N_DICT + 1 = 128 (lane-friendly)
VOCAB = N_DICT + 1
HIDDEN = 32
BATCH = 8
N_LAYERS = 1            # kernel implements the n_layers == 1, rnn_cell == 'lstm' case


# ----------------------------------------------------------------------------------
# Kernel: one grid step == one LSTM timestep for the whole batch.
# args: (scalar-prefetch ids) (inputs...) (outputs...) (scratch)
# ----------------------------------------------------------------------------------
def lstm_decode_kernel(ids_ref,                       # SMEM (T, B) int32
                       hc0_ref,                       # (B, 2H) f32   initial [h|c]
                       e_gate_ref,                    # (V, 4H) f32   emb@w_ih.T + b_ih + b_hh
                       w_hh_ref,                      # (H, 4H) bf16  w_hh.T
                       w_dec_ref,                     # (H, V)  bf16  w_dec.T
                       b_dec_ref,                     # (1, V)  f32
                       pred_ref,                      # (1, B, V) f32 out (per-step block)
                       hc_out_ref,                    # (B, 2H) f32 out (final state)
                       state_ref):                    # (B, 2H) f32 VMEM scratch (carry)
    t = pl.program_id(0)
    B, H2 = state_ref.shape
    H = H2 // 2

    # Initialize the carried state from the packed input on the first step only.
    @pl.when(t == 0)
    def _():
        state_ref[...] = hc0_ref[...]

    st = state_ref[...]                               # (B, 2H) f32
    h = st[:, :H]
    c = st[:, H:]

    # --- per-token row gather from the folded gate table (replaces one-hot matmul).
    # NOTE: out-of-range ids would read a wrong row (no bounds check), unlike
    #       nn.Embedding which raises — ids must be in [0, V).
    rows = [e_gate_ref[pl.ds(ids_ref[t, b], 1), :] for b in range(B)]
    e_rows = jnp.concatenate(rows, axis=0)            # (B, 4H) f32, biases already folded

    # --- gate pre-activations: tiny K=32 MXU matmul, bf16 operands, f32 accumulate.
    gates = e_rows + jnp.dot(h.astype(w_hh_ref.dtype), w_hh_ref[...],
                             preferred_element_type=jnp.float32)    # (B, 4H), order i,f,g,o

    sig = jax.nn.sigmoid(gates)                       # one full-vreg EUP launch (f32)
    i_g = sig[:, 0 * H:1 * H]
    f_g = sig[:, 1 * H:2 * H]
    o_g = sig[:, 3 * H:4 * H]
    g_g = jnp.tanh(gates[:, 2 * H:3 * H])

    c_new = f_g * c + i_g * g_g
    h_new = o_g * jnp.tanh(c_new)

    # --- decoder (Linear) + LogSoftmax(dim=-1), all reductions/elementwise in f32.
    logits = jnp.dot(h_new.astype(w_dec_ref.dtype), w_dec_ref[...],
                     preferred_element_type=jnp.float32) + b_dec_ref[...]   # (B, V)
    m = jnp.max(logits, axis=-1, keepdims=True)
    shifted = logits - m
    lse = jnp.log(jnp.sum(jnp.exp(shifted), axis=-1, keepdims=True))
    pred_ref[0] = shifted - lse                       # lane-dense (B, 128) store

    # Carry the new state; single full-block store (no masked sub-stores).
    state_ref[...] = jnp.concatenate([h_new, c_new], axis=-1)

    @pl.when(t == pl.num_programs(0) - 1)
    def _():
        hc_out_ref[...] = state_ref[...]


# ----------------------------------------------------------------------------------
# One-time parameter re-layout (hoisted out of the step loop).
# ----------------------------------------------------------------------------------
def prepare_params(params, mxu_dtype=jnp.bfloat16):
    emb, w_ih, w_hh, b_ih, b_hh, w_dec, b_dec = [p.astype(jnp.float32) for p in params]
    # Fold embedding + both biases into a per-token gate table (exact: each token's
    # row is selected exactly once, so the bias is added exactly once).
    e_gate = (jnp.dot(emb, w_ih.T, precision=lax.Precision.HIGHEST)
              + (b_ih + b_hh)[None, :])                       # (V, 4H) f32
    w_hh_t = w_hh.T.astype(mxu_dtype)                         # (H, 4H) bf16
    w_dec_t = w_dec.T.astype(mxu_dtype)                       # (H, V)  bf16
    b_dec_r = b_dec.reshape(1, -1)                            # (1, V)  f32
    return e_gate, w_hh_t, w_dec_t, b_dec_r


# ----------------------------------------------------------------------------------
# Multi-step decode: one pallas_call runs T LSTM steps with VMEM-resident weights.
# ----------------------------------------------------------------------------------
def lstm_decode(ids, hidden, kernel_params):
    """ids: (T, B) int32 token ids.  hidden: (h, c), each (1, B, H).
    Returns (pred (T, B, V), (h_new, c_new))."""
    e_gate, w_hh_t, w_dec_t, b_dec_r = kernel_params
    h0, c0 = hidden
    if h0.shape[0] != 1:
        raise NotImplementedError("kernel implements n_layers == 1 only")
    T, B = ids.shape
    V, G = e_gate.shape
    H = G // 4

    hc0 = jnp.concatenate([h0.reshape(B, H), c0.reshape(B, H)],
                          axis=-1).astype(jnp.float32)        # packed (B, 2H)

    grid_spec = pltpu.PrefetchScalarGridSpec(
        num_scalar_prefetch=1,                                # ids -> SMEM scalars
        grid=(T,),
        in_specs=[
            pl.BlockSpec((B, 2 * H), lambda t, ids: (0, 0)),  # packed h|c (resident)
            pl.BlockSpec((V, G),     lambda t, ids: (0, 0)),  # e_gate     (resident)
            pl.BlockSpec((H, G),     lambda t, ids: (0, 0)),  # w_hh.T     (resident)
            pl.BlockSpec((H, V),     lambda t, ids: (0, 0)),  # w_dec.T    (resident)
            pl.BlockSpec((1, V),     lambda t, ids: (0, 0)),  # b_dec      (resident)
        ],
        out_specs=(
            pl.BlockSpec((1, B, V),  lambda t, ids: (t, 0, 0)),   # per-step log-probs
            pl.BlockSpec((B, 2 * H), lambda t, ids: (0, 0)),      # final packed state
        ),
        scratch_shapes=[pltpu.VMEM((B, 2 * H), jnp.float32)],     # h/c carry
    )

    pred, hc = pl.pallas_call(
        lstm_decode_kernel,
        out_shape=(jax.ShapeDtypeStruct((T, B, V), jnp.float32),
                   jax.ShapeDtypeStruct((B, 2 * H), jnp.float32)),
        grid_spec=grid_spec,
        compiler_params=pltpu.CompilerParams(
            dimension_semantics=("arbitrary",)),              # sequential recurrence
    )(ids.astype(jnp.int32), hc0, e_gate, w_hh_t, w_dec_t, b_dec_r)

    h_new = hc[:, :H].reshape(1, B, H)
    c_new = hc[:, H:].reshape(1, B, H)
    return pred, (h_new, c_new)


def baseline_forward(x, hidden, kernel_params):
    """Module-equivalent single-step forward.  x: (B,) int32 ids."""
    pred_seq, hidden_new = lstm_decode(x[None, :].astype(jnp.int32), hidden, kernel_params)
    return pred_seq[0], hidden_new


# ----------------------------------------------------------------------------------
# Pure-JAX f32 reference (mirrors the PyTorch module) + param init.
# ----------------------------------------------------------------------------------
def reference_forward(x, hidden, params):
    emb, w_ih, w_hh, b_ih, b_hh, w_dec, b_dec = [p.astype(jnp.float32) for p in params]
    h, c = hidden[0][0], hidden[1][0]
    H = h.shape[-1]
    enc = emb[x]
    gates = enc @ w_ih.T + b_ih + h @ w_hh.T + b_hh
    i = jax.nn.sigmoid(gates[:, 0 * H:1 * H])
    f = jax.nn.sigmoid(gates[:, 1 * H:2 * H])
    g = jnp.tanh(gates[:, 2 * H:3 * H])
    o = jax.nn.sigmoid(gates[:, 3 * H:4 * H])
    c_new = f * c + i * g
    h_new = o * jnp.tanh(c_new)
    logits = h_new @ w_dec.T + b_dec
    pred = jax.nn.log_softmax(logits, axis=-1)
    return pred, (h_new[None], c_new[None])


def init_params(key, hidden_size, vocab):
    ks = jax.random.split(key, 7)
    s = 1.0 / jnp.sqrt(hidden_size)
    emb = jax.random.normal(ks[0], (vocab, hidden_size), jnp.float32)
    w_ih = jax.random.uniform(ks[1], (4 * hidden_size, hidden_size), jnp.float32, -s, s)
    w_hh = jax.random.uniform(ks[2], (4 * hidden_size, hidden_size), jnp.float32, -s, s)
    b_ih = jax.random.uniform(ks[3], (4 * hidden_size,), jnp.float32, -s, s)
    b_hh = jax.random.uniform(ks[4], (4 * hidden_size,), jnp.float32, -s, s)
    w_dec = jax.random.uniform(ks[5], (vocab, hidden_size), jnp.float32, -s, s)
    b_dec = jax.random.uniform(ks[6], (vocab,), jnp.float32, -s, s)
    return emb, w_ih, w_hh, b_ih, b_hh, w_dec, b_dec


if __name__ == "__main__":
    key = jax.random.PRNGKey(0)
    k_par, k_x, k_h, k_c = jax.random.split(key, 4)

    params = init_params(k_par, HIDDEN, VOCAB)
    kernel_params = prepare_params(params)            # hoisted: done exactly once

    hidden = (0.1 * jax.random.normal(k_h, (N_LAYERS, BATCH, HIDDEN), jnp.float32),
              0.1 * jax.random.normal(k_c, (N_LAYERS, BATCH, HIDDEN), jnp.float32))

    # --- single step (matches the PyTorch module's forward) -----------------------
    x = jax.random.randint(k_x, (BATCH,), 0, VOCAB, dtype=jnp.int32)
    fwd = jax.jit(baseline_forward)
    pred, (h1, c1) = fwd(x, hidden, kernel_params)
    jax.block_until_ready((pred, h1, c1))

    assert pred.shape == (BATCH, VOCAB)
    assert h1.shape == (N_LAYERS, BATCH, HIDDEN)
    assert c1.shape == (N_LAYERS, BATCH, HIDDEN)

    pred_ref, (h_ref, c_ref) = reference_forward(x, hidden, params)
    assert jnp.allclose(pred, pred_ref, atol=5e-2, rtol=5e-2)
    assert jnp.allclose(h1, h_ref, atol=5e-2, rtol=5e-2)
    assert jnp.allclose(c1, c_ref, atol=5e-2, rtol=5e-2)

    # --- multi-step decode: T steps in ONE pallas_call (amortized dispatch) -------
    T = 8
    ids = jax.random.randint(k_x, (T, BATCH), 0, VOCAB, dtype=jnp.int32)
    decode = jax.jit(lstm_decode)
    pred_seq, (hT, cT) = decode(ids, hidden, kernel_params)
    jax.block_until_ready((pred_seq, hT, cT))
    assert pred_seq.shape == (T, BATCH, VOCAB)

    hh = hidden
    for step in range(T):
        p_last, hh = reference_forward(ids[step], hh, params)
    assert jnp.allclose(pred_seq[-1], p_last, atol=5e-2, rtol=5e-2)
    assert jnp.allclose(hT, hh[0], atol=5e-2, rtol=5e-2)
    assert jnp.allclose(cT, hh[1], atol=5e-2, rtol=5e-2)

    print("KERNEL_OK")
</pallas_src>

<mosaic_0001>
module attributes {stable_mosaic.version = 11 : i64} {
  func.func @lstm_decode_kernel(%arg0: i32, %arg1: memref<1x8xi32, #tpu.memory_space<smem>>, %arg2: memref<8x64xf32, #tpu.memory_space<vmem>>, %arg3: memref<128x128xf32, #tpu.memory_space<vmem>>, %arg4: memref<32x128xbf16, #tpu.memory_space<vmem>>, %arg5: memref<32x128xbf16, #tpu.memory_space<vmem>>, %arg6: memref<1x128xf32, #tpu.memory_space<vmem>>, %arg7: memref<1x8x128xf32, #tpu.memory_space<vmem>>, %arg8: memref<8x64xf32, #tpu.memory_space<vmem>>, %arg9: memref<8x64xf32, #tpu.memory_space<vmem>>) attributes {dimension_semantics = [#tpu.dimension_semantics<arbitrary>], iteration_bounds = array<i64: 1>, scalar_prefetch = 1 : i64, scratch_operands = 1 : i64, tpu.core_type = #tpu.core_type<tc>, window_params = [{pipeline_mode = #tpu.pipeline_mode<synchronous>, transform_indices = @transform_0, window_bounds = array<i64: 8, 64>}, {pipeline_mode = #tpu.pipeline_mode<synchronous>, transform_indices = @transform_1, window_bounds = array<i64: 128, 128>}, {pipeline_mode = #tpu.pipeline_mode<synchronous>, transform_indices = @transform_2, window_bounds = array<i64: 32, 128>}, {pipeline_mode = #tpu.pipeline_mode<synchronous>, transform_indices = @transform_3, window_bounds = array<i64: 32, 128>}, {pipeline_mode = #tpu.pipeline_mode<synchronous>, transform_indices = @transform_4, window_bounds = array<i64: 1, 128>}, {transform_indices = @transform_5, window_bounds = array<i64: 1, 8, 128>}, {pipeline_mode = #tpu.pipeline_mode<synchronous>, transform_indices = @transform_6, window_bounds = array<i64: 8, 64>}]} {
    %c0_i32 = arith.constant 0 : i32
    %0 = arith.cmpi eq, %arg0, %c0_i32 : i32
    %1 = arith.extui %0 : i1 to i32
    %c0_i32_0 = arith.constant 0 : i32
    %2 = arith.cmpi ne, %1, %c0_i32_0 : i32
    scf.if %2 {
      %c0_28 = arith.constant 0 : index
      %c0_29 = arith.constant 0 : index
      %82 = vector.load %arg2[%c0_28, %c0_29] : memref<8x64xf32, #tpu.memory_space<vmem>>, vector<8x64xf32>
      %c0_30 = arith.constant 0 : index
      %c0_31 = arith.constant 0 : index
      %83 = vector.load %arg9[%c0_30, %c0_31] : memref<8x64xf32, #tpu.memory_space<vmem>>, vector<8x64xf32>
      tpu.vector_store %arg9[%c0_30, %c0_31], %82 {strides = array<i32>} : memref<8x64xf32, #tpu.memory_space<vmem>>, vector<8x64xf32>,
    } else {
    }
    %c0 = arith.constant 0 : index
    %c0_1 = arith.constant 0 : index
    %3 = vector.load %arg9[%c0, %c0_1] : memref<8x64xf32, #tpu.memory_space<vmem>>, vector<8x64xf32>
    %4 = vector.extract_strided_slice %3 {offsets = [0, 0], sizes = [8, 32], strides = [1, 1]} : vector<8x64xf32> to vector<8x32xf32>
    %5 = vector.extract_strided_slice %3 {offsets = [0, 32], sizes = [8, 32], strides = [1, 1]} : vector<8x64xf32> to vector<8x32xf32>
    %6 = arith.index_cast %arg0 : i32 to index
    %c0_2 = arith.constant 0 : index
    %7 = memref.load %arg1[%6, %c0_2] : memref<1x8xi32, #tpu.memory_space<smem>>
    %8 = arith.index_cast %7 : i32 to index
    %c0_3 = arith.constant 0 : index
    %9 = vector.load %arg3[%8, %c0_3] : memref<128x128xf32, #tpu.memory_space<vmem>>, vector<1x128xf32>
    %10 = arith.index_cast %arg0 : i32 to index
    %c1 = arith.constant 1 : index
    %11 = memref.load %arg1[%10, %c1] : memref<1x8xi32, #tpu.memory_space<smem>>
    %12 = arith.index_cast %11 : i32 to index
    %c0_4 = arith.constant 0 : index
    %13 = vector.load %arg3[%12, %c0_4] : memref<128x128xf32, #tpu.memory_space<vmem>>, vector<1x128xf32>
    %14 = arith.index_cast %arg0 : i32 to index
    %c2 = arith.constant 2 : index
    %15 = memref.load %arg1[%14, %c2] : memref<1x8xi32, #tpu.memory_space<smem>>
    %16 = arith.index_cast %15 : i32 to index
    %c0_5 = arith.constant 0 : index
    %17 = vector.load %arg3[%16, %c0_5] : memref<128x128xf32, #tpu.memory_space<vmem>>, vector<1x128xf32>
    %18 = arith.index_cast %arg0 : i32 to index
    %c3 = arith.constant 3 : index
    %19 = memref.load %arg1[%18, %c3] : memref<1x8xi32, #tpu.memory_space<smem>>
    %20 = arith.index_cast %19 : i32 to index
    %c0_6 = arith.constant 0 : index
    %21 = vector.load %arg3[%20, %c0_6] : memref<128x128xf32, #tpu.memory_space<vmem>>, vector<1x128xf32>
    %22 = arith.index_cast %arg0 : i32 to index
    %c4 = arith.constant 4 : index
    %23 = memref.load %arg1[%22, %c4] : memref<1x8xi32, #tpu.memory_space<smem>>
    %24 = arith.index_cast %23 : i32 to index
    %c0_7 = arith.constant 0 : index
    %25 = vector.load %arg3[%24, %c0_7] : memref<128x128xf32, #tpu.memory_space<vmem>>, vector<1x128xf32>
    %26 = arith.index_cast %arg0 : i32 to index
    %c5 = arith.constant 5 : index
    %27 = memref.load %arg1[%26, %c5] : memref<1x8xi32, #tpu.memory_space<smem>>
    %28 = arith.index_cast %27 : i32 to index
    %c0_8 = arith.constant 0 : index
    %29 = vector.load %arg3[%28, %c0_8] : memref<128x128xf32, #tpu.memory_space<vmem>>, vector<1x128xf32>
    %30 = arith.index_cast %arg0 : i32 to index
    %c6 = arith.constant 6 : index
    %31 = memref.load %arg1[%30, %c6] : memref<1x8xi32, #tpu.memory_space<smem>>
    %32 = arith.index_cast %31 : i32 to index
    %c0_9 = arith.constant 0 : index
    %33 = vector.load %arg3[%32, %c0_9] : memref<128x128xf32, #tpu.memory_space<vmem>>, vector<1x128xf32>
    %34 = arith.index_cast %arg0 : i32 to index
    %c7 = arith.constant 7 : index
    %35 = memref.load %arg1[%34, %c7] : memref<1x8xi32, #tpu.memory_space<smem>>
    %36 = arith.index_cast %35 : i32 to index
    %c0_10 = arith.constant 0 : index
    %37 = vector.load %arg3[%36, %c0_10] : memref<128x128xf32, #tpu.memory_space<vmem>>, vector<1x128xf32>
    %38 = tpu.concatenate %9, %13, %17, %21, %25, %29, %33, %37 in 0 : vector<1x128xf32>, vector<1x128xf32>, vector<1x128xf32>, vector<1x128xf32>, vector<1x128xf32>, vector<1x128xf32>, vector<1x128xf32>, vector<1x128xf32> -> vector<8x128xf32>
    %39 = arith.truncf %4 : vector<8x32xf32> to vector<8x32xbf16>
    %c0_11 = arith.constant 0 : index
    %c0_12 = arith.constant 0 : index
    %40 = vector.load %arg4[%c0_11, %c0_12] : memref<32x128xbf16, #tpu.memory_space<vmem>>, vector<32x128xbf16>
    %cst = arith.constant dense<0.000000e+00> : vector<8x128xf32>
    %41 = tpu.matmul %39, %40, %cst {dimension_numbers = #tpu.dot_dimension_numbers<[1], [0], [0], [1], [0, 0, 1, 1], [], []>} : vector<8x32xbf16>, vector<32x128xbf16>, vector<8x128xf32> -> vector<8x128xf32>
    %42 = arith.addf %38, %41 : vector<8x128xf32>
    %43 = arith.negf %42 : vector<8x128xf32>
    %44 = math.exp %43 : vector<8x128xf32>
    %cst_13 = arith.constant 1.000000e+00 : f32
    %45 = vector.broadcast %cst_13 : f32 to vector<8x128xf32>
    %46 = arith.addf %45, %44 : vector<8x128xf32>
    %47 = arith.divf %45, %46 : vector<8x128xf32>
    %48 = vector.extract_strided_slice %47 {offsets = [0, 0], sizes = [8, 32], strides = [1, 1]} : vector<8x128xf32> to vector<8x32xf32>
    %49 = vector.extract_strided_slice %47 {offsets = [0, 32], sizes = [8, 32], strides = [1, 1]} : vector<8x128xf32> to vector<8x32xf32>
    %50 = vector.extract_strided_slice %47 {offsets = [0, 96], sizes = [8, 32], strides = [1, 1]} : vector<8x128xf32> to vector<8x32xf32>
    %51 = vector.extract_strided_slice %42 {offsets = [0, 64], sizes = [8, 32], strides = [1, 1]} : vector<8x128xf32> to vector<8x32xf32>
    %52 = math.tanh %51 : vector<8x32xf32>
    %53 = arith.mulf %49, %5 : vector<8x32xf32>
    %54 = arith.mulf %48, %52 : vector<8x32xf32>
    %55 = arith.addf %53, %54 : vector<8x32xf32>
    %56 = math.tanh %55 : vector<8x32xf32>
    %57 = arith.mulf %50, %56 : vector<8x32xf32>
    %58 = arith.truncf %57 : vector<8x32xf32> to vector<8x32xbf16>
    %c0_14 = arith.constant 0 : index
    %c0_15 = arith.constant 0 : index
    %59 = vector.load %arg5[%c0_14, %c0_15] : memref<32x128xbf16, #tpu.memory_space<vmem>>, vector<32x128xbf16>
    %cst_16 = arith.constant dense<0.000000e+00> : vector<8x128xf32>
    %60 = tpu.matmul %58, %59, %cst_16 {dimension_numbers = #tpu.dot_dimension_numbers<[1], [0], [0], [1], [0, 0, 1, 1], [], []>} : vector<8x32xbf16>, vector<32x128xbf16>, vector<8x128xf32> -> vector<8x128xf32>
    %c0_17 = arith.constant 0 : index
    %c0_18 = arith.constant 0 : index
    %61 = vector.load %arg6[%c0_17, %c0_18] : memref<1x128xf32, #tpu.memory_space<vmem>>, vector<1x128xf32>
    %62 = vector.broadcast %61 : vector<1x128xf32> to vector<8x128xf32>
    %63 = arith.addf %60, %62 : vector<8x128xf32>
    %cst_19 = arith.constant dense<0xFF800000> : vector<8xf32>
    %64 = vector.multi_reduction <maximumf>, %63, %cst_19 [1] : vector<8x128xf32> to vector<8xf32>
    %65 = vector.shape_cast %64 : vector<8xf32> to vector<8x1xf32>
    %66 = vector.broadcast %65 : vector<8x1xf32> to vector<8x128xf32>
    %67 = arith.subf %63, %66 : vector<8x128xf32>
    %68 = math.exp %67 : vector<8x128xf32>
    %cst_20 = arith.constant dense<0.000000e+00> : vector<8xf32>
    %69 = vector.multi_reduction <add>, %68, %cst_20 [1] : vector<8x128xf32> to vector<8xf32>
    %70 = vector.shape_cast %69 : vector<8xf32> to vector<8x1xf32>
    %71 = math.log %70 : vector<8x1xf32>
    %72 = vector.broadcast %71 : vector<8x1xf32> to vector<8x128xf32>
    %73 = arith.subf %67, %72 : vector<8x128xf32>
    %c0_21 = arith.constant 0 : index
    %c0_22 = arith.constant 0 : index
    %c0_23 = arith.constant 0 : index
    %74 = vector.load %arg7[%c0_21, %c0_22, %c0_23] : memref<1x8x128xf32, #tpu.memory_space<vmem>>, vector<1x8x128xf32>
    %75 = vector.shape_cast %74 : vector<1x8x128xf32> to vector<8x128xf32>
    %76 = vector.shape_cast %73 : vector<8x128xf32> to vector<1x8x128xf32>
    tpu.vector_store %arg7[%c0_21, %c0_22, %c0_23], %76 {strides = array<i32>} : memref<1x8x128xf32, #tpu.memory_space<vmem>>, vector<1x8x128xf32>,
    %77 = tpu.concatenate %57, %55 in 1 : vector<8x32xf32>, vector<8x32xf32> -> vector<8x64xf32>
    %c0_24 = arith.constant 0 : index
    %c0_25 = arith.constant 0 : index
    %78 = vector.load %arg9[%c0_24, %c0_25] : memref<8x64xf32, #tpu.memory_space<vmem>>, vector<8x64xf32>
    tpu.vector_store %arg9[%c0_24, %c0_25], %77 {strides = array<i32>} : memref<8x64xf32, #tpu.memory_space<vmem>>, vector<8x64xf32>,
    %c0_i32_26 = arith.constant 0 : i32
    %79 = arith.cmpi eq, %arg0, %c0_i32_26 : i32
    %80 = arith.extui %79 : i1 to i32
    %c0_i32_27 = arith.constant 0 : i32
    %81 = arith.cmpi ne, %80, %c0_i32_27 : i32
    scf.if %81 {
      %c0_28 = arith.constant 0 : index
      %c0_29 = arith.constant 0 : index
      %82 = vector.load %arg9[%c0_28, %c0_29] : memref<8x64xf32, #tpu.memory_space<vmem>>, vector<8x64xf32>
      %c0_30 = arith.constant 0 : index
      %c0_31 = arith.constant 0 : index
      %83 = vector.load %arg8[%c0_30, %c0_31] : memref<8x64xf32, #tpu.memory_space<vmem>>, vector<8x64xf32>
      tpu.vector_store %arg8[%c0_30, %c0_31], %82 {strides = array<i32>} : memref<8x64xf32, #tpu.memory_space<vmem>>, vector<8x64xf32>,
    } else {
    }
    return
  }
  func.func @transform_0(%arg0: i32, %arg1: memref<1x8xi32, #tpu.memory_space<smem>>) -> (i32, i32) {
    %c0_i32 = arith.constant 0 : i32
    %c0_i32_0 = arith.constant 0 : i32
    %c0_i32_1 = arith.constant 0 : i32
    return %c0_i32, %c0_i32_0 : i32, i32
  }
  func.func @transform_1(%arg0: i32, %arg1: memref<1x8xi32, #tpu.memory_space<smem>>) -> (i32, i32) {
    %c0_i32 = arith.constant 0 : i32
    %c0_i32_0 = arith.constant 0 : i32
    %c0_i32_1 = arith.constant 0 : i32
    return %c0_i32, %c0_i32_0 : i32, i32
  }
  func.func @transform_2(%arg0: i32, %arg1: memref<1x8xi32, #tpu.memory_space<smem>>) -> (i32, i32) {
    %c0_i32 = arith.constant 0 : i32
    %c0_i32_0 = arith.constant 0 : i32
    %c0_i32_1 = arith.constant 0 : i32
    return %c0_i32, %c0_i32_0 : i32, i32
  }
  func.func @transform_3(%arg0: i32, %arg1: memref<1x8xi32, #tpu.memory_space<smem>>) -> (i32, i32) {
    %c0_i32 = arith.constant 0 : i32
    %c0_i32_0 = arith.constant 0 : i32
    %c0_i32_1 = arith.constant 0 : i32
    return %c0_i32, %c0_i32_0 : i32, i32
  }
  func.func @transform_4(%arg0: i32, %arg1: memref<1x8xi32, #tpu.memory_space<smem>>) -> (i32, i32) {
    %c0_i32 = arith.constant 0 : i32
    %c0_i32_0 = arith.constant 0 : i32
    %c0_i32_1 = arith.constant 0 : i32
    return %c0_i32, %c0_i32_0 : i32, i32
  }
  func.func @transform_5(%arg0: i32, %arg1: memref<1x8xi32, #tpu.memory_space<smem>>) -> (i32, i32, i32) {
    %c0_i32 = arith.constant 0 : i32
    %c0_i32_0 = arith.constant 0 : i32
    %c0_i32_1 = arith.constant 0 : i32
    return %arg0, %c0_i32, %c0_i32_0 : i32, i32, i32
  }
  func.func @transform_6(%arg0: i32, %arg1: memref<1x8xi32, #tpu.memory_space<smem>>) -> (i32, i32) {
    %c0_i32 = arith.constant 0 : i32
    %c0_i32_0 = arith.constant 0 : i32
    %c0_i32_1 = arith.constant 0 : i32
    return %c0_i32, %c0_i32_0 : i32, i32
  }
}

</mosaic_0001>

<llo_original>
// kernel: baseline_forward.1
$region0: #{baseline_forward.1}
  #allocation0 [shape = 'u32[]', space=smem, size = 0x4, offset = 0x4, fixed_abs, tag = 'smem constant byte address 0x4 - core index']
  #allocation1 [shape = 'u32[144,128]{1,0:T(1,128)}', space=vmem, size = 0x12000, scoped, tag = 'internal scratch']
  #allocation2 [shape = 'f32[8,64]{1,0:T(8,128)}', space=vmem, size = 0x1000, scoped, tag = 'scratch operand']
  #allocation3 [shape = 's32[1]{0}', space=sflag, size = 0x4, scoped, tag = 'scoped memory for baseline_forward.1']
  #allocation4 [shape = 'u8[512]{0}', space=smem, size = 0x200, scoped, tag = 'prefetched SMEM operand 0']
  %s0 = inlined_call_operand.vmem [shape: s32[1,8], index: 0, kind: input, shape index: {}]
  %s1 = inlined_call_operand.vmem [shape: f32[8,64], index: 1, kind: input, shape index: {}]
  %s2 = inlined_call_operand.hbm [shape: f32[128,128], index: 2, kind: input, shape index: {}]
  %s3 = inlined_call_operand.vmem [shape: bf16[32,128], index: 3, kind: input, shape index: {}]
  %s4 = inlined_call_operand.vmem [shape: bf16[32,128], index: 4, kind: input, shape index: {}]
  %s5 = inlined_call_operand.vmem [shape: f32[1,128], index: 5, kind: input, shape index: {}]
  %s6 = inlined_call_operand.hbm [shape: f32[1,8,128], index: 6, kind: output, shape index: {0}]
  %s7 = inlined_call_operand.vmem [shape: f32[8,64], index: 7, kind: output, shape index: {1}]
  %8 = xla_tuple %s6, %s7
  %s9 = sld [smem:[#allocation0]]
  $region50: #{baseline_forward.1} parent=0
    _
  %s11 = ssub.s32 1, %s9
  %s12 = scalar_select 0, %s11, %s9
  %s13 = sshll.u32 %s0, 4
  %s14 = int_to_ptr.vmem [resolvable:$true] %s13
  %16 = dma.vmem_to_smem %s14, 16, [#allocation4], [#allocation3]
  %17 = dma.done [#allocation3], 16
  %18 = sfence
  $region1: #{baseline_forward.1} parent=0
    #allocation5 [shape = 'u8[65536]{0}', space=vmem, size = 0x10000, scoped, tag = 'input window, operand 2, single buffered']
    #allocation6 [shape = 's32[1]{0}', space=sflag, size = 0x4, scoped, tag = 'scoped memory for baseline_forward.1']
    #allocation7 [shape = 's32[1]{0}', space=sflag, size = 0x4, scoped, tag = 'scoped memory for baseline_forward.1']
    #allocation8 [shape = 'u8[4096]{0}', space=vmem, size = 0x1000, scoped, tag = 'output window, operand 0, single buffered']
    %19 = vsyncpa [#allocation6], 0
    %20 = vsyncpa [#allocation7], 0
    // Predicated region
    $region2: #{baseline_forward.1} parent=1 // pred_check
      _
    $region3: #{baseline_forward.1} parent=1 // pred_check_branch
      %22 = sbr.rel (0) target = $region5
    $region4: #{baseline_forward.1} parent=1 // pred_region
      _
    $region5: #{baseline_forward.1} parent=1 // pred_fallthru
      _
    // Predicated region
    $region6: #{baseline_forward.1} parent=1 // pred_check
      _
    $region7: #{baseline_forward.1} parent=1 // pred_check_branch
      %24 = sbr.rel (0) target = $region9
    $region8: #{baseline_forward.1} parent=1 // pred_region
      %s26 = ssub.s32 2048, 2048
      %27 = vsyncadd [#allocation6], %s26
      %s28 = sshll.u32 [#allocation5], 4
      %s29 = int_to_ptr.vmem [resolvable:$true] %s28
      %34 = dma.hbm_to_vmem [thread:$0]  %s2, 2048, %s29, [#allocation6], 128, 128, 8
    $region9: #{baseline_forward.1} parent=1 // pred_fallthru
      _
    // Predicated region
    $region10: #{baseline_forward.1} parent=1 // pred_check
      _
    $region11: #{baseline_forward.1} parent=1 // pred_check_branch
      %36 = sbr.rel (0) target = $region13
    $region12: #{baseline_forward.1} parent=1 // pred_region
      _
    $region13: #{baseline_forward.1} parent=1 // pred_fallthru
      _
    // Predicated region
    $region14: #{baseline_forward.1} parent=1 // pred_check
      _
    $region15: #{baseline_forward.1} parent=1 // pred_check_branch
      %38 = sbr.rel (0) target = $region17
    $region16: #{baseline_forward.1} parent=1 // pred_region
      _
    $region17: #{baseline_forward.1} parent=1 // pred_fallthru
      _
    // Predicated region
    $region18: #{baseline_forward.1} parent=1 // pred_check
      _
    $region19: #{baseline_forward.1} parent=1 // pred_check_branch
      %40 = sbr.rel (0) target = $region21
    $region20: #{baseline_forward.1} parent=1 // pred_region
      _
    $region21: #{baseline_forward.1} parent=1 // pred_fallthru
      _
    // Predicated region
    $region22: #{baseline_forward.1} parent=1 // pred_check
      _
    $region23: #{baseline_forward.1} parent=1 // pred_check_branch
      %42 = sbr.rel (0) target = $region25
    $region24: #{baseline_forward.1} parent=1 // pred_region
      %43 = dma.done [#allocation6], 2048
    $region25: #{baseline_forward.1} parent=1 // pred_fallthru
      _
    %p45 = scmp.eq.s32.totalorder 0, 0
    // Predicated region
    $region26: #{baseline_forward.1} parent=1 // pred_check
      %p46 = pneg %p45
    $region27: #{baseline_forward.1} parent=1 // pred_check_branch
      %48 = sbr.rel (%p46) target = $region29
    $region28: #{baseline_forward.1} parent=1 // pred_region
      %v49 = vld [vmem:[%s1] sm:$0xff]
      %vm50 = vcmask 523264
      %51 = vst.msk [vmem:[#allocation2] sm:$0xff] %vm50, %v49
    $region29: #{baseline_forward.1} parent=1 // pred_fallthru
      _
    %v52 = vld [vmem:[#allocation2] sm:$0xff]
    %s53 = smul.u32 0, 128
    %s54 = sld [smem:[#allocation4 + %s53]]
    %s55 = scalar_lea.vmem [#allocation5], %s54
    %v56 = vld [vmem:[%s55] sm:$0x1]
    %s57 = sadd.s32 %s53, 1
    %s58 = sld [smem:[#allocation4 + %s57]]
    %s59 = scalar_lea.vmem [#allocation5], %s58
    %v60 = vld [vmem:[%s59] sm:$0x1]
    %s61 = sadd.s32 %s53, 2
    %s62 = sld [smem:[#allocation4 + %s61]]
    %s63 = scalar_lea.vmem [#allocation5], %s62
    %v64 = vld [vmem:[%s63] sm:$0x1]
    %s65 = sadd.s32 %s53, 3
    %s66 = sld [smem:[#allocation4 + %s65]]
    %s67 = scalar_lea.vmem [#allocation5], %s66
    %v68 = vld [vmem:[%s67] sm:$0x1]
    %s69 = sadd.s32 %s53, 4
    %s70 = sld [smem:[#allocation4 + %s69]]
    %s71 = scalar_lea.vmem [#allocation5], %s70
    %v72 = vld [vmem:[%s71] sm:$0x1]
    %s73 = sadd.s32 %s53, 5
    %s74 = sld [smem:[#allocation4 + %s73]]
    %s75 = scalar_lea.vmem [#allocation5], %s74
    %v76 = vld [vmem:[%s75] sm:$0x1]
    %s77 = sadd.s32 %s53, 6
    %s78 = sld [smem:[#allocation4 + %s77]]
    %s79 = scalar_lea.vmem [#allocation5], %s78
    %v80 = vld [vmem:[%s79] sm:$0x1]
    %s81 = sadd.s32 %s53, 7
    %s82 = sld [smem:[#allocation4 + %s81]]
    %s83 = scalar_lea.vmem [#allocation5], %s82
    %v84 = vld [vmem:[%s83] sm:$0x1]
    %v86 = vrot.slane %v60, 7
    %v89 = vrot.slane %v64, 6
    %v92 = vrot.slane %v68, 5
    %v95 = vrot.slane %v72, 4
    %v98 = vrot.slane %v76, 3
    %v101 = vrot.slane %v80, 2
    %v104 = vrot.slane %v84, 1
    %vm106 = vcmask 1040384
    %v107 = vsel %vm106, %v56, %v86
    %vm108 = vcmask 1041408
    %v109 = vsel %vm108, %v107, %v89
    %vm110 = vcmask 1042432
    %v111 = vsel %vm110, %v109, %v92
    %vm112 = vcmask 1043456
    %v113 = vsel %vm112, %v111, %v95
    %vm114 = vcmask 1044480
    %v115 = vsel %vm114, %v113, %v98
    %vm116 = vcmask 1045504
    %v117 = vsel %vm116, %v115, %v101
    %vm118 = vcmask 1046528
    %v119 = vsel %vm118, %v117, %v104
    %v120 = vpack.c.bf16 %v52, %v52
    %v121 = vld [vmem:[%s3] sm:$0xf]
    %v122 = vld [vmem:[%s3 + $0x4] sm:$0xf]
    %v123 = vld [vmem:[%s3 + $0x8] sm:$0xf]
    %v124 = vld [vmem:[%s3 + $0xc] sm:$0xf]
    %v129 = vunpack.c.l.b16 %v121
    %v130 = vunpack.c.l.b16 %v122
    %v131 = vunpack.c.l.b16 %v123
    %v132 = vunpack.c.l.b16 %v124
    %v133 = vpack.c.b16 %v130, %v129
    %v134 = vpack.c.b16 %v132, %v131
    %vm137 = vcmask 261120
    %v139 = vsel %vm137, %v120, 0
    %141 = vmatprep.subr.bf16.mxu0 0
    %142 = vmatpush1.bf16.msra.mxu0 %v133
    %143 = vmatprep.subr.bf16.mxu0 0
    %144 = vmatpush1.bf16.msra.mxu0 %v134
    %145 = vmatprep.subr.bf16.mxu0 0
    %146 = vmatpush1.bf16.msra.mxu0 0
    %147 = vmatprep.subr.bf16.mxu0 0
    %148 = vmatpush1.bf16.msra.mxu0 0
    %149 = vmatprep.subr.bf16.mxu0 0
    %150 = vmatpush1.bf16.msra.mxu0 0
    %151 = vmatprep.subr.bf16.mxu0 0
    %152 = vmatpush1.bf16.msra.mxu0 0
    %153 = vmatprep.subr.bf16.mxu0 0
    %154 = vmatpush1.bf16.msra.mxu0 0
    %155 = vmatprep.subr.bf16.mxu0 0
    %156 = vmatpush1.bf16.msra.mxu0 0
    %157 = vmatprep.subr.bf16.mxu0 0
    %158 = vmatpush1.bf16.msra.mxu0 0
    %159 = vmatprep.subr.bf16.mxu0 0
    %160 = vmatpush1.bf16.msra.mxu0 0
    %161 = vmatprep.subr.bf16.mxu0 0
    %162 = vmatpush1.bf16.msra.mxu0 0
    %163 = vmatprep.subr.bf16.mxu0 0
    %164 = vmatpush1.bf16.msra.mxu0 0
    %165 = vmatprep.subr.bf16.mxu0 0
    %166 = vmatpush1.bf16.msra.mxu0 0
    %167 = vmatprep.subr.bf16.mxu0 0
    %168 = vmatpush1.bf16.msra.mxu0 0
    %169 = vmatprep.subr.bf16.mxu0 0
    %170 = vmatpush1.bf16.msra.mxu0 0
    %171 = vmatprep.subr.bf16.mxu0 0
    %172 = vmatpush1.bf16.msra.mxu0 0
    %173 = vmatprep.mubr.bf16.mxu0 0
    %174 = vmatmul.mubr.bf16.gmra.mrb[0].mxu0 %v139
    %v175 = vpop.f32.mrb[0].mxu0
    %v176 = vadd.f32 0.0, %v175
    %v177 = vpop.f32.mrb[0].mxu0
    %v178 = vpop.f32.mrb[0].mxu0
    %v179 = vpop.f32.mrb[0].mxu0
    %180 = vdwg.mxu0
    %v181 = vadd.f32 %v119, %v176
    %v182 = vxor.u32 %v181, 2147483648
    %v183 = vmul.f32 %v182, 1.442695
    %v184 = vpow.pop %v183
    %v185 = vadd.f32 %v184, 1.0
    %v186 = vrcp.pop %v185
    %v187 = vmul.f32 1.0, %v186
    %v188 = vtanh.pop %v181
    %v189 = vmul.f32 %v187, %v52
    %191 = vrot.lane.b32.xlu0 %v188, 64
    %v192 = vpop.permute.xlu0 %191
    %v194 = vmul.f32 %v187, %v192
    %196 = vrot.lane.b32.xlu0 %v194, 32
    %v197 = vpop.permute.xlu0 %196
    %v199 = vadd.f32 %v189, %v197
    %v200 = vtanh.pop %v199
    %202 = vrot.lane.b32.xlu0 %v200, 64
    %v203 = vpop.permute.xlu0 %202
    %v205 = vmul.f32 %v187, %v203
    %v206 = vpack.c.bf16 %v205, %v205
    %v207 = vld [vmem:[%s4] sm:$0xf]
    %v208 = vld [vmem:[%s4 + $0x4] sm:$0xf]
    %v209 = vld [vmem:[%s4 + $0x8] sm:$0xf]
    %v210 = vld [vmem:[%s4 + $0xc] sm:$0xf]
    %v211 = vld [vmem:[%s5] sm:$0x1]
    %v213 = vlaneseq
    %v214 = vshrl.u32 %v213, 7
    %v215 = vsub.s32 0, %v214
    %v216 = vrot.slane %v211, %v215
    %219 = vrot.lane.b32.xlu0 %v206, 32
    %v220 = vpop.permute.xlu0 %219
    %v225 = vunpack.c.l.b16 %v207
    %v226 = vunpack.c.l.b16 %v208
    %v227 = vunpack.c.l.b16 %v209
    %v228 = vunpack.c.l.b16 %v210
    %v229 = vpack.c.b16 %v226, %v225
    %v230 = vpack.c.b16 %v228, %v227
    %v234 = vsel %vm137, %v220, 0
    %236 = vmatprep.subr.bf16.mxu0 0
    %237 = vmatpush1.bf16.msra.mxu0 %v229
    %238 = vmatprep.subr.bf16.mxu0 0
    %239 = vmatpush1.bf16.msra.mxu0 %v230
    %240 = vmatprep.subr.bf16.mxu0 0
    %241 = vmatpush1.bf16.msra.mxu0 0
    %242 = vmatprep.subr.bf16.mxu0 0
    %243 = vmatpush1.bf16.msra.mxu0 0
    %244 = vmatprep.subr.bf16.mxu0 0
    %245 = vmatpush1.bf16.msra.mxu0 0
    %246 = vmatprep.subr.bf16.mxu0 0
    %247 = vmatpush1.bf16.msra.mxu0 0
    %248 = vmatprep.subr.bf16.mxu0 0
    %249 = vmatpush1.bf16.msra.mxu0 0
    %250 = vmatprep.subr.bf16.mxu0 0
    %251 = vmatpush1.bf16.msra.mxu0 0
    %252 = vmatprep.subr.bf16.mxu0 0
    %253 = vmatpush1.bf16.msra.mxu0 0
    %254 = vmatprep.subr.bf16.mxu0 0
    %255 = vmatpush1.bf16.msra.mxu0 0
    %256 = vmatprep.subr.bf16.mxu0 0
    %257 = vmatpush1.bf16.msra.mxu0 0
    %258 = vmatprep.subr.bf16.mxu0 0
    %259 = vmatpush1.bf16.msra.mxu0 0
    %260 = vmatprep.subr.bf16.mxu0 0
    %261 = vmatpush1.bf16.msra.mxu0 0
    %262 = vmatprep.subr.bf16.mxu0 0
    %263 = vmatpush1.bf16.msra.mxu0 0
    %264 = vmatprep.subr.bf16.mxu0 0
    %265 = vmatpush1.bf16.msra.mxu0 0
    %266 = vmatprep.subr.bf16.mxu0 0
    %267 = vmatpush1.bf16.msra.mxu0 0
    %268 = vmatprep.mubr.bf16.mxu0 0
    %269 = vmatmul.mubr.bf16.gmra.mrb[0].mxu0 %v234
    %v270 = vpop.f32.mrb[0].mxu0
    %v271 = vadd.f32 %v216, %v270
    %v272 = vpop.f32.mrb[0].mxu0
    %v273 = vpop.f32.mrb[0].mxu0
    %v274 = vpop.f32.mrb[0].mxu0
    %275 = vdwg.mxu0
    %276 = vmax.xlane.f32.xlu0 %v271
    %v277 = vpop.xlane.xlu0 %276
    %v278 = vsub.f32 %v271, %v277
    %v279 = vmul.f32 %v278, 1.442695
    %v280 = vpow.pop %v279
    %281 = vadd.xlane.f32.xlu0 %v280
    %v282 = vpop.xlane.xlu0 %281
    %v283 = vlog2.pop %v282
    %v284 = vmul.f32 %v283, 0.6931472
    %v285 = vsub.f32 %v278, %v284
    %286 = vst [vmem:[#allocation8] sm:$0xff] %v285
    %288 = vrot.lane.b32.xlu0 %v205, 32
    %v289 = vpop.permute.xlu0 %288
    %v291 = vsel %vm137, %v289, %v199
    %vm292 = vcmask 523264
    %293 = vst.msk [vmem:[#allocation2] sm:$0xff] %vm292, %v291
    // Predicated region
    $region30: #{baseline_forward.1} parent=1 // pred_check
      %p294 = pneg %p45
    $region31: #{baseline_forward.1} parent=1 // pred_check_branch
      %296 = sbr.rel (%p294) target = $region33
    $region32: #{baseline_forward.1} parent=1 // pred_region
      %v297 = vld [vmem:[#allocation2] sm:$0xff]
      %298 = vst.msk [vmem:[%s7] sm:$0xff] %vm292, %v297
    $region33: #{baseline_forward.1} parent=1 // pred_fallthru
      _
    // Predicated region
    $region34: #{baseline_forward.1} parent=1 // pred_check
      _
    $region35: #{baseline_forward.1} parent=1 // pred_check_branch
      %300 = sbr.rel (0) target = $region37
    $region36: #{baseline_forward.1} parent=1 // pred_region
      %s302 = ssub.s32 128, 128
      %303 = vsyncadd [#allocation7], %s302
      %s305 = sshll.u32 [#allocation8], 4
      %s306 = int_to_ptr.vmem [resolvable:$true] %s305
      %308 = dma.vmem_to_hbm [thread:$0]  %s306, 128, %s6, [#allocation7]
    $region37: #{baseline_forward.1} parent=1 // pred_fallthru
      _
    // Predicated region
    $region38: #{baseline_forward.1} parent=1 // pred_check
      _
    $region39: #{baseline_forward.1} parent=1 // pred_check_branch
      %310 = sbr.rel (0) target = $region41
    $region40: #{baseline_forward.1} parent=1 // pred_region
      _
    $region41: #{baseline_forward.1} parent=1 // pred_fallthru
      _
    // Predicated region
    $region42: #{baseline_forward.1} parent=1 // pred_check
      _
    $region43: #{baseline_forward.1} parent=1 // pred_check_branch
      %312 = sbr.rel (0) target = $region45
    $region44: #{baseline_forward.1} parent=1 // pred_region
      %313 = dma.done [#allocation7], 128
    $region45: #{baseline_forward.1} parent=1 // pred_fallthru
      _
    // Predicated region
    $region46: #{baseline_forward.1} parent=1 // pred_check
      _
    $region47: #{baseline_forward.1} parent=1 // pred_check_branch
      %315 = sbr.rel (0) target = $region49
    $region48: #{baseline_forward.1} parent=1 // pred_region
      _
    $region49: #{baseline_forward.1} parent=1 // pred_fallthru
      _
    %316 = vsyncpa [#allocation6], 1
    %317 = vsyncpa [#allocation7], 1

</llo_original>
